<compile_context>
chip_gen: v7x
topology: tpu7x:2x2x1
jax: 0.10.0
libtpu: 0.0.40
codegen_flags: <defaults>
</compile_context>

<pallas_src>
import functools

import jax
import jax.numpy as jnp
import numpy as np
from jax import lax
from jax.experimental import pallas as pl
from jax.experimental.pallas import tpu as pltpu

EPS = 1e-5


def _residual_kernel(use_1x1conv, H, W, C, inv_count, *refs):
    """Whole residual block on lane-folded (N*H, W*C) activations."""
    if use_1x1conv:
        (x_ref, w1_ref, w2_ref, g1_ref, be1_ref, g2_ref, be2_ref,
         b3l_ref, out_ref) = refs
    else:
        (x_ref, w1_ref, w2_ref, g1_ref, be1_ref, g2_ref, be2_ref,
         out_ref) = refs

    NH, WC = out_ref.shape

    # (NH, 1) boundary masks implementing the H-direction zero padding.
    h_of_row = lax.broadcasted_iota(jnp.int32, (NH, 1), 0) % H
    not_top = (h_of_row != 0).astype(jnp.float32)        # zero for image row 0
    not_bot = (h_of_row != H - 1).astype(jnp.float32)    # zero for image row H-1

    x = x_ref[...]                                        # (NH, W*Cin) bf16

    def taps(p):
        # p slabs (each WC lanes): [dh=0, dh=1, dh=2] taps of the 3x3 conv.
        #   dh=0: input row h feeds output row h+1  -> shift down by 1 row.
        #   dh=2: input row h feeds output row h-1  -> shift up by 1 row.
        # Sublane rolls run on the XLU; wrap-around rows are zeroed by the
        # boundary masks (they always land on image row 0 / H-1).
        from_above = pltpu.roll(p[:, 0:WC], shift=1, axis=0)
        from_below = pltpu.roll(p[:, 2 * WC:3 * WC], shift=NH - 1, axis=0)
        return p[:, WC:2 * WC] + not_top * from_above + not_bot * from_below

    def lane_group_allreduce(v):
        # (1, W*C) -> (1, W*C): every lane ends up holding the sum over the W
        # lane groups of its channel (lane layout is channel-innermost with
        # period C).  Cyclic lane-roll fold; result is per-channel sums
        # replicated across all W groups, so no channel->lane broadcast needed.
        if W & (W - 1) == 0:                   # power-of-two W: log2(W) steps
            shift = WC // 2
            while shift >= C:
                v = v + pltpu.roll(v, shift=shift, axis=1)
                shift //= 2
            return v
        acc = v                                # general W: W-1 rolls (tiny)
        for k in range(1, W):
            acc = acc + pltpu.roll(v, shift=k * C, axis=1)
        return acc

    def bn(z, g_ref, be_ref, relu):
        # Training-mode batch norm; stats stay f32 end to end (VPU + XLU only).
        s1 = lane_group_allreduce(jnp.sum(z, axis=0, keepdims=True))       # (1, WC)
        s2 = lane_group_allreduce(jnp.sum(z * z, axis=0, keepdims=True))   # (1, WC)
        mean = s1 * inv_count
        var = s2 * inv_count - mean * mean          # biased variance
        scale = g_ref[...] * lax.rsqrt(var + EPS)   # gamma/beta arrive lane-tiled
        offset = be_ref[...] - mean * scale
        out = z * scale + offset
        return jnp.maximum(out, 0.0) if relu else out

    # conv1 (+ fused 1x1 shortcut) -> bn1 -> relu : ONE MXU push.  The fused
    # banded weight carries the 3 dh taps (and the shortcut, if any) as extra
    # 128-lane output slabs.  Conv biases b1/b2 cancel under batch norm.
    p1 = jnp.dot(x, w1_ref[...], preferred_element_type=jnp.float32)
    y = bn(taps(p1), g1_ref, be1_ref, relu=True)

    # conv2 -> bn2 : ONE MXU push.
    p2 = jnp.dot(y.astype(jnp.bfloat16), w2_ref[...],
                 preferred_element_type=jnp.float32)
    y2 = bn(taps(p2), g2_ref, be2_ref, relu=False)

    # Shortcut path.
    if use_1x1conv:
        sc = p1[:, 3 * WC:4 * WC] + b3l_ref[...]    # slab fused into conv1
    else:
        sc = x.astype(jnp.float32)                  # identity (Cin == C)

    out_ref[...] = jnp.maximum(y2 + sc, 0.0)        # lane-dense (NH, WC) store


def prepare_residual_params(params, W, use_1x1conv):
    """Precompute lane-folded ('banded') fused weights.  One-time per weight
    update — keep this off the per-step hot path."""
    w1 = jnp.asarray(params["w1"], jnp.float32)       # (3, 3, Cin, C) HWIO
    w2 = jnp.asarray(params["w2"], jnp.float32)       # (3, 3, C, C)
    Cin, C = w1.shape[2], w1.shape[3]

    def banded(w, ci, co):
        # B[dh][p*ci + i, q*co + o] = w[dh, p-q+1, i, o] (0 outside the band):
        # folds the dw taps and the W-direction zero padding into the weight;
        # the 3 dh taps are concatenated along the output (lane) dim so a whole
        # conv is a single matmul (NH, W*ci) @ (W*ci, 3*W*co).
        mats = []
        for dh in range(3):
            acc = jnp.zeros((W, ci, W, co), jnp.float32)
            for dw in range(3):
                shift_eye = jnp.eye(W, k=-(dw - 1), dtype=jnp.float32)
                acc = acc + jnp.einsum("pq,ic->piqc", shift_eye, w[dh, dw])
            mats.append(acc.reshape(W * ci, W * co))
        return jnp.concatenate(mats, axis=1)          # (W*ci, 3*W*co)

    B1 = banded(w1, Cin, C)
    if use_1x1conv:
        w3 = jnp.asarray(params["w3"], jnp.float32)   # (Cin, C)
        B3 = jnp.einsum("pq,ic->piqc", jnp.eye(W, dtype=jnp.float32),
                        w3).reshape(W * Cin, W * C)
        B1 = jnp.concatenate([B1, B3], axis=1)        # (W*Cin, 4*W*C)

    def lane_tile(v):                                 # (1, C) -> (1, W*C)
        return jnp.tile(jnp.asarray(v, jnp.float32).reshape(1, C), (1, W))

    prepared = {
        "W1f": B1.astype(jnp.bfloat16),
        "W2f": banded(w2, C, C).astype(jnp.bfloat16),
        "g1l": lane_tile(params["g1"]),
        "be1l": lane_tile(params["be1"]),
        "g2l": lane_tile(params["g2"]),
        "be2l": lane_tile(params["be2"]),
        # NOTE: conv biases b1/b2 intentionally omitted — a per-channel bias is
        # cancelled exactly by the training-mode BN mean subtraction.
    }
    if use_1x1conv:
        prepared["b3l"] = lane_tile(params["b3"])
    return prepared


def residual_forward(x_nchw, prepared, use_1x1conv):
    """Pallas residual block. x_nchw: (N, Cin, H, W) f32 -> (N, C, H, W) f32."""
    N, Cin, H, W = x_nchw.shape
    WC = prepared["g1l"].shape[-1]
    C = WC // W
    if not use_1x1conv:
        assert Cin == C, "identity shortcut requires input_channels == num_channels"

    # NCHW -> lane-folded (N*H, W*Cin); cast to bf16 ONCE here (halves the
    # input DMA; the MXU truncates to bf16 anyway).
    x2d = (jnp.transpose(x_nchw, (0, 2, 3, 1))
           .reshape(N * H, W * Cin).astype(jnp.bfloat16))

    inputs = [x2d, prepared["W1f"], prepared["W2f"],
              prepared["g1l"], prepared["be1l"], prepared["g2l"], prepared["be2l"]]
    if use_1x1conv:
        inputs.append(prepared["b3l"])

    # VMEM budget from actual buffer sizes + headroom for the f32 intermediates
    # (p1/p2/y) and compiler scratch; stay well under v7x's 64 MiB physical.
    io_bytes = sum(int(np.prod(a.shape)) * a.dtype.itemsize for a in inputs)
    io_bytes += N * H * WC * 4                              # f32 output
    scratch_bytes = 12 * N * H * WC * 4                     # f32 intermediates
    vmem_limit = int(min(48 * 1024 * 1024,
                         max(16 * 1024 * 1024, 2 * io_bytes + scratch_bytes)))

    kernel = functools.partial(_residual_kernel, use_1x1conv, H, W, C,
                               1.0 / float(N * H * W))
    out2d = pl.pallas_call(
        kernel,
        out_shape=jax.ShapeDtypeStruct((N * H, WC), jnp.float32),
        in_specs=[pl.BlockSpec(memory_space=pltpu.MemorySpace.VMEM)] * len(inputs),
        out_specs=pl.BlockSpec(memory_space=pltpu.MemorySpace.VMEM),
        compiler_params=pltpu.CompilerParams(vmem_limit_bytes=vmem_limit),
    )(*inputs)
    # (N*H, W*C) and (N, H, W, C) share the same row-major layout: reshape is free.
    return jnp.transpose(out2d.reshape(N, H, W, C), (0, 3, 1, 2))


def residual_reference(x_nchw, params, use_1x1conv):
    """Pure-JAX reference at full f32 precision (includes the conv biases)."""
    x = jnp.transpose(x_nchw, (0, 2, 3, 1)).astype(jnp.float32)

    def conv(v, w, b, same):
        return lax.conv_general_dilated(
            v, w, window_strides=(1, 1),
            padding="SAME" if same else "VALID",
            dimension_numbers=("NHWC", "HWIO", "NHWC"),
            precision=lax.Precision.HIGHEST) + b.reshape(1, 1, 1, -1)

    def bn(v, g, b):
        m = jnp.mean(v, axis=(0, 1, 2), keepdims=True)
        var = jnp.mean((v - m) ** 2, axis=(0, 1, 2), keepdims=True)
        return (v - m) * lax.rsqrt(var + EPS) * g.reshape(1, 1, 1, -1) + b.reshape(1, 1, 1, -1)

    y = jax.nn.relu(bn(conv(x, params["w1"], params["b1"], True),
                       params["g1"], params["be1"]))
    y = bn(conv(y, params["w2"], params["b2"], True), params["g2"], params["be2"])
    if use_1x1conv:
        w3 = params["w3"].reshape(1, 1, *params["w3"].shape)
        x = conv(x, w3, params["b3"], False)
    out = jax.nn.relu(y + x)
    return jnp.transpose(out, (0, 3, 1, 2))


if __name__ == "__main__":
    N, Cin, C, H, W = 2, 4, 8, 16, 16

    key = jax.random.PRNGKey(0)
    ks = jax.random.split(key, 12)
    params = {
        "w1": 0.1 * jax.random.normal(ks[0], (3, 3, Cin, C), jnp.float32),
        "b1": 0.1 * jax.random.normal(ks[1], (1, C), jnp.float32),
        "g1": 1.0 + 0.1 * jax.random.normal(ks[2], (1, C), jnp.float32),
        "be1": 0.1 * jax.random.normal(ks[3], (1, C), jnp.float32),
        "w2": 0.1 * jax.random.normal(ks[4], (3, 3, C, C), jnp.float32),
        "b2": 0.1 * jax.random.normal(ks[5], (1, C), jnp.float32),
        "g2": 1.0 + 0.1 * jax.random.normal(ks[6], (1, C), jnp.float32),
        "be2": 0.1 * jax.random.normal(ks[7], (1, C), jnp.float32),
        "w3": 0.1 * jax.random.normal(ks[8], (Cin, C), jnp.float32),
        "b3": 0.1 * jax.random.normal(ks[9], (1, C), jnp.float32),
    }
    x = jax.random.normal(ks[10], (N, Cin, H, W), jnp.float32)

    # Tolerance: convs run as a single bf16 MXU pass (f32 accumulate) and the
    # input is bf16, giving ~1e-3 relative error per conv vs. the f32-HIGHEST
    # reference (BN statistics themselves stay f32 end to end).
    ATOL = RTOL = 3e-2

    # Case 1: projection (1x1 conv) shortcut, Cin != C.
    prepared = prepare_residual_params(params, W, use_1x1conv=True)
    out = jax.block_until_ready(residual_forward(x, prepared, use_1x1conv=True))
    assert out.shape == (N, C, H, W)
    ref = residual_reference(x, params, use_1x1conv=True)
    np.testing.assert_allclose(np.asarray(out), np.asarray(ref), atol=ATOL, rtol=RTOL)

    # Case 2: identity shortcut (requires Cin == C).
    params_id = dict(params)
    params_id["w1"] = 0.1 * jax.random.normal(ks[11], (3, 3, C, C), jnp.float32)
    x_id = jax.random.normal(ks[10], (N, C, H, W), jnp.float32)
    prepared_id = prepare_residual_params(params_id, W, use_1x1conv=False)
    out_id = jax.block_until_ready(residual_forward(x_id, prepared_id, use_1x1conv=False))
    ref_id = residual_reference(x_id, params_id, use_1x1conv=False)
    np.testing.assert_allclose(np.asarray(out_id), np.asarray(ref_id), atol=ATOL, rtol=RTOL)

    print("KERNEL_OK")
</pallas_src>

<mosaic_0001>
module attributes {stable_mosaic.version = 11 : i64} {
  func.func @_residual_kernel(%arg0: memref<32x64xbf16, #tpu.memory_space<vmem>>, %arg1: memref<64x512xbf16, #tpu.memory_space<vmem>>, %arg2: memref<128x384xbf16, #tpu.memory_space<vmem>>, %arg3: memref<1x128xf32, #tpu.memory_space<vmem>>, %arg4: memref<1x128xf32, #tpu.memory_space<vmem>>, %arg5: memref<1x128xf32, #tpu.memory_space<vmem>>, %arg6: memref<1x128xf32, #tpu.memory_space<vmem>>, %arg7: memref<1x128xf32, #tpu.memory_space<vmem>>, %arg8: memref<32x128xf32, #tpu.memory_space<vmem>>) attributes {dimension_semantics = [], scalar_prefetch = 0 : i64, scratch_operands = 0 : i64, tpu.core_type = #tpu.core_type<tc>} {
    %0 = tpu.iota {dimensions = array<i32: 0>} : vector<32x1xi32>
    %c16_i32 = arith.constant 16 : i32
    %c0_i32 = arith.constant 0 : i32
    %1 = arith.cmpi eq, %c16_i32, %c0_i32 : i32
    %c1_i32 = arith.constant 1 : i32
    %2 = arith.select %1, %c1_i32, %c16_i32 : i32
    %3 = vector.broadcast %2 : i32 to vector<32x1xi32>
    %4 = arith.remsi %0, %3 : vector<32x1xi32>
    %c0_i32_0 = arith.constant 0 : i32
    %5 = vector.broadcast %c0_i32_0 : i32 to vector<32x1xi32>
    %6 = arith.cmpi ne, %4, %5 : vector<32x1xi32>
    %c0_i32_1 = arith.constant 0 : i32
    %7 = vector.broadcast %c0_i32_1 : i32 to vector<32x1xi32>
    %8 = arith.cmpi slt, %4, %7 : vector<32x1xi32>
    %c0_i32_2 = arith.constant 0 : i32
    %9 = arith.cmpi slt, %2, %c0_i32_2 : i32
    %10 = vector.broadcast %9 : i1 to vector<32x1xi1>
    %11 = vector.broadcast %10 : vector<32x1xi1> to vector<32x1xi1>
    %12 = arith.xori %8, %11 : vector<32x1xi1>
    %13 = arith.andi %12, %6 : vector<32x1xi1>
    %14 = vector.broadcast %2 : i32 to vector<32x1xi32>
    %15 = arith.addi %4, %14 : vector<32x1xi32>
    %16 = arith.select %13, %15, %4 : vector<32x1xi1>, vector<32x1xi32>
    %c0_i32_3 = arith.constant 0 : i32
    %17 = vector.broadcast %c0_i32_3 : i32 to vector<32x1xi32>
    %18 = arith.cmpi ne, %16, %17 : vector<32x1xi32>
    %19 = arith.extui %18 : vector<32x1xi1> to vector<32x1xi32>
    %20 = arith.sitofp %19 : vector<32x1xi32> to vector<32x1xf32>
    %c15_i32 = arith.constant 15 : i32
    %21 = vector.broadcast %c15_i32 : i32 to vector<32x1xi32>
    %22 = arith.cmpi ne, %16, %21 : vector<32x1xi32>
    %23 = arith.extui %22 : vector<32x1xi1> to vector<32x1xi32>
    %24 = arith.sitofp %23 : vector<32x1xi32> to vector<32x1xf32>
    %c0 = arith.constant 0 : index
    %c0_4 = arith.constant 0 : index
    %25 = vector.load %arg0[%c0, %c0_4] : memref<32x64xbf16, #tpu.memory_space<vmem>>, vector<32x64xbf16>
    %c0_5 = arith.constant 0 : index
    %c0_6 = arith.constant 0 : index
    %26 = vector.load %arg1[%c0_5, %c0_6] : memref<64x512xbf16, #tpu.memory_space<vmem>>, vector<64x512xbf16>
    %cst = arith.constant dense<0.000000e+00> : vector<32x512xf32>
    %27 = tpu.matmul %25, %26, %cst {dimension_numbers = #tpu.dot_dimension_numbers<[1], [0], [0], [1], [0, 0, 1, 1], [], []>} : vector<32x64xbf16>, vector<64x512xbf16>, vector<32x512xf32> -> vector<32x512xf32>
    %28 = vector.extract_strided_slice %27 {offsets = [0, 0], sizes = [32, 128], strides = [1, 1]} : vector<32x512xf32> to vector<32x128xf32>
    %c1_i32_7 = arith.constant 1 : i32
    %29 = tpu.dynamic_rotate %28 by %c1_i32_7 dim 0 : vector<32x128xf32>, i32 -> vector<32x128xf32>
    %30 = vector.extract_strided_slice %27 {offsets = [0, 256], sizes = [32, 128], strides = [1, 1]} : vector<32x512xf32> to vector<32x128xf32>
    %c31_i32 = arith.constant 31 : i32
    %31 = tpu.dynamic_rotate %30 by %c31_i32 dim 0 : vector<32x128xf32>, i32 -> vector<32x128xf32>
    %32 = vector.extract_strided_slice %27 {offsets = [0, 128], sizes = [32, 128], strides = [1, 1]} : vector<32x512xf32> to vector<32x128xf32>
    %33 = vector.broadcast %20 : vector<32x1xf32> to vector<32x128xf32>
    %34 = arith.mulf %33, %29 : vector<32x128xf32>
    %35 = arith.addf %32, %34 : vector<32x128xf32>
    %36 = vector.broadcast %24 : vector<32x1xf32> to vector<32x128xf32>
    %37 = arith.mulf %36, %31 : vector<32x128xf32>
    %38 = arith.addf %35, %37 : vector<32x128xf32>
    %cst_8 = arith.constant dense<0.000000e+00> : vector<128xf32>
    %39 = vector.multi_reduction <add>, %38, %cst_8 [0] : vector<32x128xf32> to vector<128xf32>
    %40 = vector.shape_cast %39 : vector<128xf32> to vector<1x128xf32>
    %c64_i32 = arith.constant 64 : i32
    %41 = tpu.dynamic_rotate %40 by %c64_i32 dim 1 : vector<1x128xf32>, i32 -> vector<1x128xf32>
    %42 = arith.addf %40, %41 : vector<1x128xf32>
    %c32_i32 = arith.constant 32 : i32
    %43 = tpu.dynamic_rotate %42 by %c32_i32 dim 1 : vector<1x128xf32>, i32 -> vector<1x128xf32>
    %44 = arith.addf %42, %43 : vector<1x128xf32>
    %c16_i32_9 = arith.constant 16 : i32
    %45 = tpu.dynamic_rotate %44 by %c16_i32_9 dim 1 : vector<1x128xf32>, i32 -> vector<1x128xf32>
    %46 = arith.addf %44, %45 : vector<1x128xf32>
    %c8_i32 = arith.constant 8 : i32
    %47 = tpu.dynamic_rotate %46 by %c8_i32 dim 1 : vector<1x128xf32>, i32 -> vector<1x128xf32>
    %48 = arith.addf %46, %47 : vector<1x128xf32>
    %49 = arith.mulf %38, %38 : vector<32x128xf32>
    %cst_10 = arith.constant dense<0.000000e+00> : vector<128xf32>
    %50 = vector.multi_reduction <add>, %49, %cst_10 [0] : vector<32x128xf32> to vector<128xf32>
    %51 = vector.shape_cast %50 : vector<128xf32> to vector<1x128xf32>
    %c64_i32_11 = arith.constant 64 : i32
    %52 = tpu.dynamic_rotate %51 by %c64_i32_11 dim 1 : vector<1x128xf32>, i32 -> vector<1x128xf32>
    %53 = arith.addf %51, %52 : vector<1x128xf32>
    %c32_i32_12 = arith.constant 32 : i32
    %54 = tpu.dynamic_rotate %53 by %c32_i32_12 dim 1 : vector<1x128xf32>, i32 -> vector<1x128xf32>
    %55 = arith.addf %53, %54 : vector<1x128xf32>
    %c16_i32_13 = arith.constant 16 : i32
    %56 = tpu.dynamic_rotate %55 by %c16_i32_13 dim 1 : vector<1x128xf32>, i32 -> vector<1x128xf32>
    %57 = arith.addf %55, %56 : vector<1x128xf32>
    %c8_i32_14 = arith.constant 8 : i32
    %58 = tpu.dynamic_rotate %57 by %c8_i32_14 dim 1 : vector<1x128xf32>, i32 -> vector<1x128xf32>
    %59 = arith.addf %57, %58 : vector<1x128xf32>
    %cst_15 = arith.constant 0.001953125 : f32
    %60 = vector.broadcast %cst_15 : f32 to vector<1x128xf32>
    %61 = arith.mulf %48, %60 : vector<1x128xf32>
    %cst_16 = arith.constant 0.001953125 : f32
    %62 = vector.broadcast %cst_16 : f32 to vector<1x128xf32>
    %63 = arith.mulf %59, %62 : vector<1x128xf32>
    %64 = arith.mulf %61, %61 : vector<1x128xf32>
    %65 = arith.subf %63, %64 : vector<1x128xf32>
    %c0_17 = arith.constant 0 : index
    %c0_18 = arith.constant 0 : index
    %66 = vector.load %arg3[%c0_17, %c0_18] : memref<1x128xf32, #tpu.memory_space<vmem>>, vector<1x128xf32>
    %cst_19 = arith.constant 9.99999974E-6 : f32
    %67 = vector.broadcast %cst_19 : f32 to vector<1x128xf32>
    %68 = arith.addf %65, %67 : vector<1x128xf32>
    %69 = math.rsqrt %68 : vector<1x128xf32>
    %70 = arith.mulf %66, %69 : vector<1x128xf32>
    %c0_20 = arith.constant 0 : index
    %c0_21 = arith.constant 0 : index
    %71 = vector.load %arg4[%c0_20, %c0_21] : memref<1x128xf32, #tpu.memory_space<vmem>>, vector<1x128xf32>
    %72 = arith.mulf %61, %70 : vector<1x128xf32>
    %73 = arith.subf %71, %72 : vector<1x128xf32>
    %74 = vector.broadcast %70 : vector<1x128xf32> to vector<32x128xf32>
    %75 = arith.mulf %38, %74 : vector<32x128xf32>
    %76 = vector.broadcast %73 : vector<1x128xf32> to vector<32x128xf32>
    %77 = arith.addf %75, %76 : vector<32x128xf32>
    %cst_22 = arith.constant 0.000000e+00 : f32
    %78 = vector.broadcast %cst_22 : f32 to vector<32x128xf32>
    %79 = arith.maximumf %77, %78 : vector<32x128xf32>
    %80 = arith.truncf %79 : vector<32x128xf32> to vector<32x128xbf16>
    %c0_23 = arith.constant 0 : index
    %c0_24 = arith.constant 0 : index
    %81 = vector.load %arg2[%c0_23, %c0_24] : memref<128x384xbf16, #tpu.memory_space<vmem>>, vector<128x384xbf16>
    %cst_25 = arith.constant dense<0.000000e+00> : vector<32x384xf32>
    %82 = tpu.matmul %80, %81, %cst_25 {dimension_numbers = #tpu.dot_dimension_numbers<[1], [0], [0], [1], [0, 0, 1, 1], [], []>} : vector<32x128xbf16>, vector<128x384xbf16>, vector<32x384xf32> -> vector<32x384xf32>
    %83 = vector.extract_strided_slice %82 {offsets = [0, 0], sizes = [32, 128], strides = [1, 1]} : vector<32x384xf32> to vector<32x128xf32>
    %c1_i32_26 = arith.constant 1 : i32
    %84 = tpu.dynamic_rotate %83 by %c1_i32_26 dim 0 : vector<32x128xf32>, i32 -> vector<32x128xf32>
    %85 = vector.extract_strided_slice %82 {offsets = [0, 256], sizes = [32, 128], strides = [1, 1]} : vector<32x384xf32> to vector<32x128xf32>
    %c31_i32_27 = arith.constant 31 : i32
    %86 = tpu.dynamic_rotate %85 by %c31_i32_27 dim 0 : vector<32x128xf32>, i32 -> vector<32x128xf32>
    %87 = vector.extract_strided_slice %82 {offsets = [0, 128], sizes = [32, 128], strides = [1, 1]} : vector<32x384xf32> to vector<32x128xf32>
    %88 = vector.broadcast %20 : vector<32x1xf32> to vector<32x128xf32>
    %89 = arith.mulf %88, %84 : vector<32x128xf32>
    %90 = arith.addf %87, %89 : vector<32x128xf32>
    %91 = vector.broadcast %24 : vector<32x1xf32> to vector<32x128xf32>
    %92 = arith.mulf %91, %86 : vector<32x128xf32>
    %93 = arith.addf %90, %92 : vector<32x128xf32>
    %cst_28 = arith.constant dense<0.000000e+00> : vector<128xf32>
    %94 = vector.multi_reduction <add>, %93, %cst_28 [0] : vector<32x128xf32> to vector<128xf32>
    %95 = vector.shape_cast %94 : vector<128xf32> to vector<1x128xf32>
    %c64_i32_29 = arith.constant 64 : i32
    %96 = tpu.dynamic_rotate %95 by %c64_i32_29 dim 1 : vector<1x128xf32>, i32 -> vector<1x128xf32>
    %97 = arith.addf %95, %96 : vector<1x128xf32>
    %c32_i32_30 = arith.constant 32 : i32
    %98 = tpu.dynamic_rotate %97 by %c32_i32_30 dim 1 : vector<1x128xf32>, i32 -> vector<1x128xf32>
    %99 = arith.addf %97, %98 : vector<1x128xf32>
    %c16_i32_31 = arith.constant 16 : i32
    %100 = tpu.dynamic_rotate %99 by %c16_i32_31 dim 1 : vector<1x128xf32>, i32 -> vector<1x128xf32>
    %101 = arith.addf %99, %100 : vector<1x128xf32>
    %c8_i32_32 = arith.constant 8 : i32
    %102 = tpu.dynamic_rotate %101 by %c8_i32_32 dim 1 : vector<1x128xf32>, i32 -> vector<1x128xf32>
    %103 = arith.addf %101, %102 : vector<1x128xf32>
    %104 = arith.mulf %93, %93 : vector<32x128xf32>
    %cst_33 = arith.constant dense<0.000000e+00> : vector<128xf32>
    %105 = vector.multi_reduction <add>, %104, %cst_33 [0] : vector<32x128xf32> to vector<128xf32>
    %106 = vector.shape_cast %105 : vector<128xf32> to vector<1x128xf32>
    %c64_i32_34 = arith.constant 64 : i32
    %107 = tpu.dynamic_rotate %106 by %c64_i32_34 dim 1 : vector<1x128xf32>, i32 -> vector<1x128xf32>
    %108 = arith.addf %106, %107 : vector<1x128xf32>
    %c32_i32_35 = arith.constant 32 : i32
    %109 = tpu.dynamic_rotate %108 by %c32_i32_35 dim 1 : vector<1x128xf32>, i32 -> vector<1x128xf32>
    %110 = arith.addf %108, %109 : vector<1x128xf32>
    %c16_i32_36 = arith.constant 16 : i32
    %111 = tpu.dynamic_rotate %110 by %c16_i32_36 dim 1 : vector<1x128xf32>, i32 -> vector<1x128xf32>
    %112 = arith.addf %110, %111 : vector<1x128xf32>
    %c8_i32_37 = arith.constant 8 : i32
    %113 = tpu.dynamic_rotate %112 by %c8_i32_37 dim 1 : vector<1x128xf32>, i32 -> vector<1x128xf32>
    %114 = arith.addf %112, %113 : vector<1x128xf32>
    %cst_38 = arith.constant 0.001953125 : f32
    %115 = vector.broadcast %cst_38 : f32 to vector<1x128xf32>
    %116 = arith.mulf %103, %115 : vector<1x128xf32>
    %cst_39 = arith.constant 0.001953125 : f32
    %117 = vector.broadcast %cst_39 : f32 to vector<1x128xf32>
    %118 = arith.mulf %114, %117 : vector<1x128xf32>
    %119 = arith.mulf %116, %116 : vector<1x128xf32>
    %120 = arith.subf %118, %119 : vector<1x128xf32>
    %c0_40 = arith.constant 0 : index
    %c0_41 = arith.constant 0 : index
    %121 = vector.load %arg5[%c0_40, %c0_41] : memref<1x128xf32, #tpu.memory_space<vmem>>, vector<1x128xf32>
    %cst_42 = arith.constant 9.99999974E-6 : f32
    %122 = vector.broadcast %cst_42 : f32 to vector<1x128xf32>
    %123 = arith.addf %120, %122 : vector<1x128xf32>
    %124 = math.rsqrt %123 : vector<1x128xf32>
    %125 = arith.mulf %121, %124 : vector<1x128xf32>
    %c0_43 = arith.constant 0 : index
    %c0_44 = arith.constant 0 : index
    %126 = vector.load %arg6[%c0_43, %c0_44] : memref<1x128xf32, #tpu.memory_space<vmem>>, vector<1x128xf32>
    %127 = arith.mulf %116, %125 : vector<1x128xf32>
    %128 = arith.subf %126, %127 : vector<1x128xf32>
    %129 = vector.broadcast %125 : vector<1x128xf32> to vector<32x128xf32>
    %130 = arith.mulf %93, %129 : vector<32x128xf32>
    %131 = vector.broadcast %128 : vector<1x128xf32> to vector<32x128xf32>
    %132 = arith.addf %130, %131 : vector<32x128xf32>
    %133 = vector.extract_strided_slice %27 {offsets = [0, 384], sizes = [32, 128], strides = [1, 1]} : vector<32x512xf32> to vector<32x128xf32>
    %c0_45 = arith.constant 0 : index
    %c0_46 = arith.constant 0 : index
    %134 = vector.load %arg7[%c0_45, %c0_46] : memref<1x128xf32, #tpu.memory_space<vmem>>, vector<1x128xf32>
    %135 = vector.broadcast %134 : vector<1x128xf32> to vector<32x128xf32>
    %136 = arith.addf %133, %135 : vector<32x128xf32>
    %137 = arith.addf %132, %136 : vector<32x128xf32>
    %cst_47 = arith.constant 0.000000e+00 : f32
    %138 = vector.broadcast %cst_47 : f32 to vector<32x128xf32>
    %139 = arith.maximumf %137, %138 : vector<32x128xf32>
    %c0_48 = arith.constant 0 : index
    %c0_49 = arith.constant 0 : index
    %140 = vector.load %arg8[%c0_48, %c0_49] : memref<32x128xf32, #tpu.memory_space<vmem>>, vector<32x128xf32>
    tpu.vector_store %arg8[%c0_48, %c0_49], %139 {strides = array<i32>} : memref<32x128xf32, #tpu.memory_space<vmem>>, vector<32x128xf32>,
    return
  }
}

</mosaic_0001>

<llo_original>
// kernel: tpu_custom_call.1
$region0: #{tpu_custom_call.1}
  #allocation0 [shape = 'u32[]', space=smem, size = 0x4, offset = 0x4, fixed_abs, tag = 'smem constant byte address 0x4 - core index']
  #allocation1 [shape = 'u32[144,128]{1,0:T(1,128)}', space=vmem, size = 0x12000, scoped, tag = 'internal scratch']
  %s0 = inlined_call_operand.hbm [shape: bf16[32,64], index: 0, kind: input, shape index: {}]
  %s1 = inlined_call_operand.hbm [shape: bf16[64,512], index: 1, kind: input, shape index: {}]
  %s2 = inlined_call_operand.hbm [shape: bf16[128,384], index: 2, kind: input, shape index: {}]
  %s3 = inlined_call_operand.vmem [shape: f32[1,128], index: 3, kind: input, shape index: {}]
  %s4 = inlined_call_operand.vmem [shape: f32[1,128], index: 4, kind: input, shape index: {}]
  %s5 = inlined_call_operand.vmem [shape: f32[1,128], index: 5, kind: input, shape index: {}]
  %s6 = inlined_call_operand.vmem [shape: f32[1,128], index: 6, kind: input, shape index: {}]
  %s7 = inlined_call_operand.vmem [shape: f32[1,128], index: 7, kind: input, shape index: {}]
  %s8 = inlined_call_operand.hbm [shape: f32[32,128], index: 8, kind: output, shape index: {}]
  %s9 = sld [smem:[#allocation0]]
  $region54: #{tpu_custom_call.1} parent=0
    _
  %s11 = ssub.s32 1, %s9
  %s12 = scalar_select 0, %s11, %s9
  $region1: #{tpu_custom_call.1} parent=0
    #allocation2 [shape = 'u8[8192]{0}', space=vmem, size = 0x2000, scoped, tag = 'input window, operand 0, single buffered']
    #allocation3 [shape = 's32[1]{0}', space=sflag, size = 0x4, scoped, tag = 'scoped memory for tpu_custom_call.1']
    #allocation4 [shape = 's32[1]{0}', space=sflag, size = 0x4, scoped, tag = 'scoped memory for tpu_custom_call.1']
    #allocation5 [shape = 'u8[65536]{0}', space=vmem, size = 0x10000, scoped, tag = 'input window, operand 1, single buffered']
    #allocation6 [shape = 's32[1]{0}', space=sflag, size = 0x4, scoped, tag = 'scoped memory for tpu_custom_call.1']
    #allocation7 [shape = 'u8[98304]{0}', space=vmem, size = 0x18000, scoped, tag = 'input window, operand 2, single buffered']
    #allocation8 [shape = 'u8[16384]{0}', space=vmem, size = 0x4000, scoped, tag = 'output window, operand 0, single buffered']
    %13 = vsyncpa [#allocation3], 0
    %14 = vsyncpa [#allocation6], 0
    %15 = vsyncpa [#allocation4], 0
    // Predicated region
    $region2: #{tpu_custom_call.1} parent=1 // pred_check
      _
    $region3: #{tpu_custom_call.1} parent=1 // pred_check_branch
      %17 = sbr.rel (0) target = $region5
    $region4: #{tpu_custom_call.1} parent=1 // pred_region
      %s19 = ssub.s32 256, 256
      %20 = vsyncadd [#allocation3], %s19
      %s21 = sshll.u32 [#allocation2], 4
      %s22 = int_to_ptr.vmem [resolvable:$true] %s21
      %27 = dma.hbm_to_vmem [thread:$0]  %s0, 256, %s22, [#allocation3], 64, 64, 4
    $region5: #{tpu_custom_call.1} parent=1 // pred_fallthru
      _
    // Predicated region
    $region6: #{tpu_custom_call.1} parent=1 // pred_check
      _
    $region7: #{tpu_custom_call.1} parent=1 // pred_check_branch
      %29 = sbr.rel (0) target = $region9
    $region8: #{tpu_custom_call.1} parent=1 // pred_region
      %s31 = ssub.s32 2048, 2048
      %32 = vsyncadd [#allocation6], %s31
      %s33 = sshll.u32 [#allocation5], 4
      %s34 = int_to_ptr.vmem [resolvable:$true] %s33
      %39 = dma.hbm_to_vmem [thread:$0]  %s1, 2048, %s34, [#allocation6], 256, 256, 16
    $region9: #{tpu_custom_call.1} parent=1 // pred_fallthru
      _
    // Predicated region
    $region10: #{tpu_custom_call.1} parent=1 // pred_check
      _
    $region11: #{tpu_custom_call.1} parent=1 // pred_check_branch
      %41 = sbr.rel (0) target = $region13
    $region12: #{tpu_custom_call.1} parent=1 // pred_region
      %s43 = ssub.s32 3072, 3072
      %44 = vsyncadd [#allocation6], %s43
      %s45 = sshll.u32 [#allocation7], 4
      %s46 = int_to_ptr.vmem [resolvable:$true] %s45
      %51 = dma.hbm_to_vmem [thread:$0]  %s2, 3072, %s46, [#allocation6], 192, 192, 12
    $region13: #{tpu_custom_call.1} parent=1 // pred_fallthru
      _
    // Predicated region
    $region14: #{tpu_custom_call.1} parent=1 // pred_check
      _
    $region15: #{tpu_custom_call.1} parent=1 // pred_check_branch
      %53 = sbr.rel (0) target = $region17
    $region16: #{tpu_custom_call.1} parent=1 // pred_region
      _
    $region17: #{tpu_custom_call.1} parent=1 // pred_fallthru
      _
    // Predicated region
    $region18: #{tpu_custom_call.1} parent=1 // pred_check
      _
    $region19: #{tpu_custom_call.1} parent=1 // pred_check_branch
      %55 = sbr.rel (0) target = $region21
    $region20: #{tpu_custom_call.1} parent=1 // pred_region
      _
    $region21: #{tpu_custom_call.1} parent=1 // pred_fallthru
      _
    // Predicated region
    $region22: #{tpu_custom_call.1} parent=1 // pred_check
      _
    $region23: #{tpu_custom_call.1} parent=1 // pred_check_branch
      %57 = sbr.rel (0) target = $region25
    $region24: #{tpu_custom_call.1} parent=1 // pred_region
      _
    $region25: #{tpu_custom_call.1} parent=1 // pred_fallthru
      _
    // Predicated region
    $region26: #{tpu_custom_call.1} parent=1 // pred_check
      _
    $region27: #{tpu_custom_call.1} parent=1 // pred_check_branch
      %59 = sbr.rel (0) target = $region29
    $region28: #{tpu_custom_call.1} parent=1 // pred_region
      _
    $region29: #{tpu_custom_call.1} parent=1 // pred_fallthru
      _
    // Predicated region
    $region30: #{tpu_custom_call.1} parent=1 // pred_check
      _
    $region31: #{tpu_custom_call.1} parent=1 // pred_check_branch
      %61 = sbr.rel (0) target = $region33
    $region32: #{tpu_custom_call.1} parent=1 // pred_region
      _
    $region33: #{tpu_custom_call.1} parent=1 // pred_fallthru
      _
    // Predicated region
    $region34: #{tpu_custom_call.1} parent=1 // pred_check
      _
    $region35: #{tpu_custom_call.1} parent=1 // pred_check_branch
      %63 = sbr.rel (0) target = $region37
    $region36: #{tpu_custom_call.1} parent=1 // pred_region
      %64 = dma.done [#allocation3], 256
    $region37: #{tpu_custom_call.1} parent=1 // pred_fallthru
      _
    // Predicated region
    $region38: #{tpu_custom_call.1} parent=1 // pred_check
      _
    $region39: #{tpu_custom_call.1} parent=1 // pred_check_branch
      %66 = sbr.rel (0) target = $region41
    $region40: #{tpu_custom_call.1} parent=1 // pred_region
      %67 = dma.done [#allocation6], 2048
    $region41: #{tpu_custom_call.1} parent=1 // pred_fallthru
      _
    // Predicated region
    $region42: #{tpu_custom_call.1} parent=1 // pred_check
      _
    $region43: #{tpu_custom_call.1} parent=1 // pred_check_branch
      %69 = sbr.rel (0) target = $region45
    $region44: #{tpu_custom_call.1} parent=1 // pred_region
      %70 = dma.done [#allocation6], 3072
    $region45: #{tpu_custom_call.1} parent=1 // pred_fallthru
      _
    %v72 = vlaneseq
    %v73 = vshrl.u32 %v72, 7
    %v74 = vadd.s32 %v73, 8
    %v75 = vadd.s32 %v73, 16
    %v76 = vadd.s32 %v73, 24
    %vm77 = vcmp.lt.s32.totalorder %v73, 0
    %v78 = vsub.s32 0, %v73
    %v79 = vsel %vm77, %v78, %v73
    %v80 = vshrl.u32 %v79, 4
    %v81 = vand.u32 %v79, 15
    %v82 = vsub.s32 0, %v81
    %v83 = vsel %vm77, %v82, %v81
    %vm84 = vcmp.lt.s32.totalorder %v74, 0
    %v85 = vsub.s32 0, %v74
    %v86 = vsel %vm84, %v85, %v74
    %v87 = vshrl.u32 %v86, 4
    %v88 = vand.u32 %v86, 15
    %v89 = vsub.s32 0, %v88
    %v90 = vsel %vm84, %v89, %v88
    %vm91 = vcmp.lt.s32.totalorder %v75, 0
    %v92 = vsub.s32 0, %v75
    %v93 = vsel %vm91, %v92, %v75
    %v94 = vshrl.u32 %v93, 4
    %v95 = vand.u32 %v93, 15
    %v96 = vsub.s32 0, %v95
    %v97 = vsel %vm91, %v96, %v95
    %vm98 = vcmp.lt.s32.totalorder %v76, 0
    %v99 = vsub.s32 0, %v76
    %v100 = vsel %vm98, %v99, %v76
    %v101 = vshrl.u32 %v100, 4
    %v102 = vand.u32 %v100, 15
    %v103 = vsub.s32 0, %v102
    %v104 = vsel %vm98, %v103, %v102
    %vm105 = vcmp.ne.s32.totalorder %v83, 0
    %vm106 = vcmp.ne.s32.totalorder %v90, 0
    %vm107 = vcmp.ne.s32.totalorder %v97, 0
    %vm108 = vcmp.ne.s32.totalorder %v104, 0
    %vm109 = vcmp.lt.s32.totalorder %v83, 0
    %vm110 = vcmp.lt.s32.totalorder %v90, 0
    %vm111 = vcmp.lt.s32.totalorder %v97, 0
    %vm112 = vcmp.lt.s32.totalorder %v104, 0
    %vm113 = vmand %vm109, %vm105
    %vm114 = vmand %vm110, %vm106
    %vm115 = vmand %vm111, %vm107
    %vm116 = vmand %vm112, %vm108
    %v117 = vadd.s32 %v83, 16
    %v118 = vadd.s32 %v90, 16
    %v119 = vadd.s32 %v97, 16
    %v120 = vadd.s32 %v104, 16
    %v121 = vsel %vm113, %v117, %v83
    %v122 = vsel %vm114, %v118, %v90
    %v123 = vsel %vm115, %v119, %v97
    %v124 = vsel %vm116, %v120, %v104
    %vm125 = vcmp.ne.s32.totalorder %v121, 0
    %vm126 = vcmp.ne.s32.totalorder %v122, 0
    %vm127 = vcmp.ne.s32.totalorder %v123, 0
    %vm128 = vcmp.ne.s32.totalorder %v124, 0
    %v129 = vsel %vm125, 1, 0
    %v130 = vsel %vm126, 1, 0
    %v131 = vsel %vm127, 1, 0
    %v132 = vsel %vm128, 1, 0
    %v133 = vcvt.s32.f32 %v129
    %v134 = vcvt.s32.f32 %v130
    %v135 = vcvt.s32.f32 %v131
    %v136 = vcvt.s32.f32 %v132
    %vm137 = vcmp.ne.s32.totalorder %v121, 15
    %vm138 = vcmp.ne.s32.totalorder %v122, 15
    %vm139 = vcmp.ne.s32.totalorder %v123, 15
    %vm140 = vcmp.ne.s32.totalorder %v124, 15
    %v141 = vsel %vm137, 1, 0
    %v142 = vsel %vm138, 1, 0
    %v143 = vsel %vm139, 1, 0
    %v144 = vsel %vm140, 1, 0
    %v145 = vcvt.s32.f32 %v141
    %v146 = vcvt.s32.f32 %v142
    %v147 = vcvt.s32.f32 %v143
    %v148 = vcvt.s32.f32 %v144
    %v149 = vld [vmem:[#allocation2] sm:$0xf]
    %v150 = vld [vmem:[#allocation2 + $0x4] sm:$0xf]
    %v151 = vld [vmem:[#allocation2 + $0x8] sm:$0xf]
    %v152 = vld [vmem:[#allocation2 + $0xc] sm:$0xf]
    %v153 = vld [vmem:[#allocation5] sm:$0xff]
    %v154 = vld [vmem:[#allocation5 + $0x8] sm:$0xff]
    %v155 = vld [vmem:[#allocation5 + $0x10] sm:$0xff]
    %v156 = vld [vmem:[#allocation5 + $0x18] sm:$0xff]
    %v157 = vld [vmem:[#allocation5 + $0x20] sm:$0xff]
    %v158 = vld [vmem:[#allocation5 + $0x28] sm:$0xff]
    %v159 = vld [vmem:[#allocation5 + $0x30] sm:$0xff]
    %v160 = vld [vmem:[#allocation5 + $0x38] sm:$0xff]
    %v161 = vld [vmem:[#allocation5 + $0x40] sm:$0xff]
    %v162 = vld [vmem:[#allocation5 + $0x48] sm:$0xff]
    %v163 = vld [vmem:[#allocation5 + $0x50] sm:$0xff]
    %v164 = vld [vmem:[#allocation5 + $0x58] sm:$0xff]
    %v165 = vld [vmem:[#allocation5 + $0x60] sm:$0xff]
    %v166 = vld [vmem:[#allocation5 + $0x68] sm:$0xff]
    %v167 = vld [vmem:[#allocation5 + $0x70] sm:$0xff]
    %v168 = vld [vmem:[#allocation5 + $0x78] sm:$0xff]
    %v173 = vunpack.c.l.b16 %v149
    %v174 = vunpack.c.l.b16 %v150
    %v175 = vunpack.c.l.b16 %v151
    %v176 = vunpack.c.l.b16 %v152
    %v177 = vpack.c.b16 %v174, %v173
    %v178 = vpack.c.b16 %v176, %v175
    %v195 = vunpack.c.l.b16 %v153
    %v196 = vunpack.c.h.b16 %v153
    %v197 = vunpack.c.l.b16 %v154
    %v198 = vunpack.c.h.b16 %v154
    %v199 = vunpack.c.l.b16 %v155
    %v200 = vunpack.c.h.b16 %v155
    %v201 = vunpack.c.l.b16 %v156
    %v202 = vunpack.c.h.b16 %v156
    %v203 = vunpack.c.l.b16 %v157
    %v204 = vunpack.c.h.b16 %v157
    %v205 = vunpack.c.l.b16 %v158
    %v206 = vunpack.c.h.b16 %v158
    %v207 = vunpack.c.l.b16 %v159
    %v208 = vunpack.c.h.b16 %v159
    %v209 = vunpack.c.l.b16 %v160
    %v210 = vunpack.c.h.b16 %v160
    %v211 = vunpack.c.l.b16 %v161
    %v212 = vunpack.c.h.b16 %v161
    %v213 = vunpack.c.l.b16 %v162
    %v214 = vunpack.c.h.b16 %v162
    %v215 = vunpack.c.l.b16 %v163
    %v216 = vunpack.c.h.b16 %v163
    %v217 = vunpack.c.l.b16 %v164
    %v218 = vunpack.c.h.b16 %v164
    %v219 = vunpack.c.l.b16 %v165
    %v220 = vunpack.c.h.b16 %v165
    %v221 = vunpack.c.l.b16 %v166
    %v222 = vunpack.c.h.b16 %v166
    %v223 = vunpack.c.l.b16 %v167
    %v224 = vunpack.c.h.b16 %v167
    %v225 = vunpack.c.l.b16 %v168
    %v226 = vunpack.c.h.b16 %v168
    %v227 = vpack.c.b16 %v199, %v195
    %v228 = vpack.c.b16 %v200, %v196
    %v229 = vpack.c.b16 %v201, %v197
    %v230 = vpack.c.b16 %v202, %v198
    %v231 = vpack.c.b16 %v207, %v203
    %v232 = vpack.c.b16 %v208, %v204
    %v233 = vpack.c.b16 %v209, %v205
    %v234 = vpack.c.b16 %v210, %v206
    %v235 = vpack.c.b16 %v215, %v211
    %v236 = vpack.c.b16 %v216, %v212
    %v237 = vpack.c.b16 %v217, %v213
    %v238 = vpack.c.b16 %v218, %v214
    %v239 = vpack.c.b16 %v223, %v219
    %v240 = vpack.c.b16 %v224, %v220
    %v241 = vpack.c.b16 %v225, %v221
    %v242 = vpack.c.b16 %v226, %v222
    %vm259 = vcmask 523264
    %v261 = vsel %vm259, %v177, 0
    %v264 = vsel %vm259, %v178, 0
    %266 = vmatprep.subr.bf16.mxu0 %v228
    %267 = vmatpush1.bf16.msra.mxu0 %v227
    %268 = vmatprep.subr.bf16.mxu0 %v232
    %269 = vmatpush1.bf16.msra.mxu0 %v231
    %270 = vmatprep.subr.bf16.mxu0 %v236
    %271 = vmatpush1.bf16.msra.mxu0 %v235
    %272 = vmatprep.subr.bf16.mxu0 %v240
    %273 = vmatpush1.bf16.msra.mxu0 %v239
    %274 = vmatprep.subr.bf16.mxu0 0
    %275 = vmatpush1.bf16.msra.mxu0 0
    %276 = vmatprep.subr.bf16.mxu0 0
    %277 = vmatpush1.bf16.msra.mxu0 0
    %278 = vmatprep.subr.bf16.mxu0 0
    %279 = vmatpush1.bf16.msra.mxu0 0
    %280 = vmatprep.subr.bf16.mxu0 0
    %281 = vmatpush1.bf16.msra.mxu0 0
    %282 = vmatprep.subr.bf16.mxu0 0
    %283 = vmatpush1.bf16.msra.mxu0 0
    %284 = vmatprep.subr.bf16.mxu0 0
    %285 = vmatpush1.bf16.msra.mxu0 0
    %286 = vmatprep.subr.bf16.mxu0 0
    %287 = vmatpush1.bf16.msra.mxu0 0
    %288 = vmatprep.subr.bf16.mxu0 0
    %289 = vmatpush1.bf16.msra.mxu0 0
    %290 = vmatprep.subr.bf16.mxu0 0
    %291 = vmatpush1.bf16.msra.mxu0 0
    %292 = vmatprep.subr.bf16.mxu0 0
    %293 = vmatpush1.bf16.msra.mxu0 0
    %294 = vmatprep.subr.bf16.mxu0 0
    %295 = vmatpush1.bf16.msra.mxu0 0
    %296 = vmatprep.subr.bf16.mxu0 0
    %297 = vmatpush1.bf16.msra.mxu0 0
    %298 = vmatprep.mubr.bf16.mxu0 0
    %299 = vmatmul.mubr.bf16.gmra.mrb[0].mxu0 %v261
    %v300 = vpop.f32.mrb[0].mxu0
    %v301 = vadd.f32 0.0, %v300
    %v302 = vpop.f32.mrb[0].mxu0
    %v303 = vadd.f32 0.0, %v302
    %v304 = vpop.f32.mrb[0].mxu0
    %v305 = vadd.f32 0.0, %v304
    %v306 = vpop.f32.mrb[0].mxu0
    %v307 = vadd.f32 0.0, %v306
    %308 = vmatprep.mubr.bf16.mxu0 0
    %309 = vmatmul.mubr.bf16.gmra.mrb[0].mxu0 %v264
    %v310 = vpop.f32.mrb[0].mxu0
    %v311 = vadd.f32 0.0, %v310
    %v312 = vpop.f32.mrb[0].mxu0
    %v313 = vadd.f32 0.0, %v312
    %v314 = vpop.f32.mrb[0].mxu0
    %v315 = vadd.f32 0.0, %v314
    %v316 = vpop.f32.mrb[0].mxu0
    %v317 = vadd.f32 0.0, %v316
    %318 = vdwg.mxu0
    %319 = vmatprep.subr.bf16.mxu0 %v230
    %320 = vmatpush1.bf16.msra.mxu0 %v229
    %321 = vmatprep.subr.bf16.mxu0 %v234
    %322 = vmatpush1.bf16.msra.mxu0 %v233
    %323 = vmatprep.subr.bf16.mxu0 %v238
    %324 = vmatpush1.bf16.msra.mxu0 %v237
    %325 = vmatprep.subr.bf16.mxu0 %v242
    %326 = vmatpush1.bf16.msra.mxu0 %v241
    %327 = vmatprep.subr.bf16.mxu0 0
    %328 = vmatpush1.bf16.msra.mxu0 0
    %329 = vmatprep.subr.bf16.mxu0 0
    %330 = vmatpush1.bf16.msra.mxu0 0
    %331 = vmatprep.subr.bf16.mxu0 0
    %332 = vmatpush1.bf16.msra.mxu0 0
    %333 = vmatprep.subr.bf16.mxu0 0
    %334 = vmatpush1.bf16.msra.mxu0 0
    %335 = vmatprep.subr.bf16.mxu0 0
    %336 = vmatpush1.bf16.msra.mxu0 0
    %337 = vmatprep.subr.bf16.mxu0 0
    %338 = vmatpush1.bf16.msra.mxu0 0
    %339 = vmatprep.subr.bf16.mxu0 0
    %340 = vmatpush1.bf16.msra.mxu0 0
    %341 = vmatprep.subr.bf16.mxu0 0
    %342 = vmatpush1.bf16.msra.mxu0 0
    %343 = vmatprep.subr.bf16.mxu0 0
    %344 = vmatpush1.bf16.msra.mxu0 0
    %345 = vmatprep.subr.bf16.mxu0 0
    %346 = vmatpush1.bf16.msra.mxu0 0
    %347 = vmatprep.subr.bf16.mxu0 0
    %348 = vmatpush1.bf16.msra.mxu0 0
    %349 = vmatprep.subr.bf16.mxu0 0
    %350 = vmatpush1.bf16.msra.mxu0 0
    %351 = vmatprep.mubr.bf16.mxu0 0
    %352 = vmatmul.mubr.bf16.gmra.mrb[0].mxu0 %v261
    %v353 = vpop.f32.mrb[0].mxu0
    %v354 = vadd.f32 0.0, %v353
    %v355 = vpop.f32.mrb[0].mxu0
    %v356 = vadd.f32 0.0, %v355
    %v357 = vpop.f32.mrb[0].mxu0
    %v358 = vadd.f32 0.0, %v357
    %v359 = vpop.f32.mrb[0].mxu0
    %v360 = vadd.f32 0.0, %v359
    %361 = vmatprep.mubr.bf16.mxu0 0
    %362 = vmatmul.mubr.bf16.gmra.mrb[0].mxu0 %v264
    %v363 = vpop.f32.mrb[0].mxu0
    %v364 = vadd.f32 0.0, %v363
    %v365 = vpop.f32.mrb[0].mxu0
    %v366 = vadd.f32 0.0, %v365
    %v367 = vpop.f32.mrb[0].mxu0
    %v368 = vadd.f32 0.0, %v367
    %v369 = vpop.f32.mrb[0].mxu0
    %v370 = vadd.f32 0.0, %v369
    %371 = vdwg.mxu0
    %v372 = vrot.slane %v301, 7
    %v373 = vrot.slane %v305, 7
    %v374 = vrot.slane %v311, 7
    %v375 = vrot.slane %v315, 7
    %vm376 = vcmp.lt.s32.totalorder %v73, 1
    %v377 = vsel %vm376, %v374, %v375
    %v378 = vsel %vm376, %v373, %v374
    %v379 = vsel %vm376, %v372, %v373
    %v380 = vsel %vm376, %v375, %v372
    %v381 = vrot.slane %v354, 1
    %v382 = vrot.slane %v358, 1
    %v383 = vrot.slane %v364, 1
    %v384 = vrot.slane %v368, 1
    %vm385 = vcmp.lt.s32.totalorder %v73, 7
    %v386 = vsel %vm385, %v383, %v384
    %v387 = vsel %vm385, %v382, %v383
    %v388 = vsel %vm385, %v381, %v382
    %v389 = vsel %vm385, %v384, %v381
    %v390 = vmul.f32 %v133, %v380
    %v391 = vmul.f32 %v134, %v379
    %v392 = vmul.f32 %v135, %v378
    %v393 = vmul.f32 %v136, %v377
    %v394 = vadd.f32 %v303, %v390
    %v395 = vadd.f32 %v307, %v391
    %v396 = vadd.f32 %v313, %v392
    %v397 = vadd.f32 %v317, %v393
    %v398 = vmul.f32 %v145, %v388
    %v399 = vmul.f32 %v146, %v387
    %v400 = vmul.f32 %v147, %v386
    %v401 = vmul.f32 %v148, %v389
    %v402 = vadd.f32 %v394, %v398
    %v403 = vadd.f32 %v395, %v399
    %v404 = vadd.f32 %v396, %v400
    %v405 = vadd.f32 %v397, %v401
    %v406 = vadd.f32 %v402, %v403
    %v407 = vadd.f32 %v406, %v404
    %v408 = vadd.f32 %v407, %v405
    %v409 = vrot.slane %v408, 4
    %v410 = vadd.f32 %v408, %v409
    %v411 = vrot.slane %v410, 2
    %v412 = vadd.f32 %v410, %v411
    %v413 = vrot.slane %v412, 1
    %v414 = vadd.f32 %v412, %v413
    %415 = vrot.lane.b32.xlu0 %v414, 64
    %v416 = vpop.permute.xlu0 %415
    %v417 = vadd.f32 %v414, %v416
    %418 = vrot.lane.b32.xlu0 %v417, 32
    %v419 = vpop.permute.xlu0 %418
    %v420 = vadd.f32 %v417, %v419
    %421 = vrot.lane.b32.xlu0 %v420, 16
    %v422 = vpop.permute.xlu0 %421
    %v423 = vadd.f32 %v420, %v422
    %424 = vrot.lane.b32.xlu0 %v423, 8
    %v425 = vpop.permute.xlu0 %424
    %v426 = vadd.f32 %v423, %v425
    %v427 = vmul.f32 %v402, %v402
    %v428 = vmul.f32 %v403, %v403
    %v429 = vmul.f32 %v404, %v404
    %v430 = vmul.f32 %v405, %v405
    %v431 = vadd.f32 %v427, %v428
    %v432 = vadd.f32 %v431, %v429
    %v433 = vadd.f32 %v432, %v430
    %v434 = vrot.slane %v433, 4
    %v435 = vadd.f32 %v433, %v434
    %v436 = vrot.slane %v435, 2
    %v437 = vadd.f32 %v435, %v436
    %v438 = vrot.slane %v437, 1
    %v439 = vadd.f32 %v437, %v438
    %440 = vrot.lane.b32.xlu0 %v439, 64
    %v441 = vpop.permute.xlu0 %440
    %v442 = vadd.f32 %v439, %v441
    %443 = vrot.lane.b32.xlu0 %v442, 32
    %v444 = vpop.permute.xlu0 %443
    %v445 = vadd.f32 %v442, %v444
    %446 = vrot.lane.b32.xlu0 %v445, 16
    %v447 = vpop.permute.xlu0 %446
    %v448 = vadd.f32 %v445, %v447
    %449 = vrot.lane.b32.xlu0 %v448, 8
    %v450 = vpop.permute.xlu0 %449
    %v451 = vadd.f32 %v448, %v450
    %v452 = vmul.f32 %v426, 0.001953125
    %v453 = vmul.f32 %v451, 0.001953125
    %v454 = vmul.f32 %v452, %v452
    %v455 = vsub.f32 %v453, %v454
    %v456 = vld [vmem:[%s3] sm:$0x1]
    %v457 = vadd.f32 %v455, 1e-05
    %v458 = vrsqrt.pop %v457
    %v459 = vmul.f32 %v456, %v458
    %v460 = vld [vmem:[%s4] sm:$0x1]
    %v461 = vmul.f32 %v452, %v459
    %v462 = vsub.f32 %v460, %v461
    %v464 = vlaneseq
    %v465 = vshrl.u32 %v464, 7
    %v466 = vsub.s32 0, %v465
    %v467 = vrot.slane %v459, %v466
    %v469 = vmul.f32 %v402, %v467
    %v470 = vmul.f32 %v403, %v467
    %v471 = vmul.f32 %v404, %v467
    %v472 = vmul.f32 %v405, %v467
    %v474 = vlaneseq
    %v475 = vshrl.u32 %v474, 7
    %v476 = vsub.s32 0, %v475
    %v477 = vrot.slane %v462, %v476
    %v479 = vadd.f32 %v469, %v477
    %v480 = vadd.f32 %v470, %v477
    %v481 = vadd.f32 %v471, %v477
    %v482 = vadd.f32 %v472, %v477
    %v483 = vmax.f32 %v479, 0.0
    %v484 = vmax.f32 %v480, 0.0
    %v485 = vmax.f32 %v481, 0.0
    %v486 = vmax.f32 %v482, 0.0
    %v487 = vpack.c.bf16 %v484, %v483
    %v488 = vpack.c.bf16 %v486, %v485
    %v489 = vld [vmem:[#allocation7] sm:$0xff]
    %v490 = vld [vmem:[#allocation7 + $0x8] sm:$0xf]
    %v491 = vld [vmem:[#allocation7 + $0xc] sm:$0xff]
    %v492 = vld [vmem:[#allocation7 + $0x14] sm:$0xf]
    %v493 = vld [vmem:[#allocation7 + $0x18] sm:$0xff]
    %v494 = vld [vmem:[#allocation7 + $0x20] sm:$0xf]
    %v495 = vld [vmem:[#allocation7 + $0x24] sm:$0xff]
    %v496 = vld [vmem:[#allocation7 + $0x2c] sm:$0xf]
    %v497 = vld [vmem:[#allocation7 + $0x30] sm:$0xff]
    %v498 = vld [vmem:[#allocation7 + $0x38] sm:$0xf]
    %v499 = vld [vmem:[#allocation7 + $0x3c] sm:$0xff]
    %v500 = vld [vmem:[#allocation7 + $0x44] sm:$0xf]
    %v501 = vld [vmem:[#allocation7 + $0x48] sm:$0xff]
    %v502 = vld [vmem:[#allocation7 + $0x50] sm:$0xf]
    %v503 = vld [vmem:[#allocation7 + $0x54] sm:$0xff]
    %v504 = vld [vmem:[#allocation7 + $0x5c] sm:$0xf]
    %v505 = vld [vmem:[#allocation7 + $0x60] sm:$0xff]
    %v506 = vld [vmem:[#allocation7 + $0x68] sm:$0xf]
    %v507 = vld [vmem:[#allocation7 + $0x6c] sm:$0xff]
    %v508 = vld [vmem:[#allocation7 + $0x74] sm:$0xf]
    %v509 = vld [vmem:[#allocation7 + $0x78] sm:$0xff]
    %v510 = vld [vmem:[#allocation7 + $0x80] sm:$0xf]
    %v511 = vld [vmem:[#allocation7 + $0x84] sm:$0xff]
    %v512 = vld [vmem:[#allocation7 + $0x8c] sm:$0xf]
    %v513 = vld [vmem:[#allocation7 + $0x90] sm:$0xff]
    %v514 = vld [vmem:[#allocation7 + $0x98] sm:$0xf]
    %v515 = vld [vmem:[#allocation7 + $0x9c] sm:$0xff]
    %v516 = vld [vmem:[#allocation7 + $0xa4] sm:$0xf]
    %v517 = vld [vmem:[#allocation7 + $0xa8] sm:$0xff]
    %v518 = vld [vmem:[#allocation7 + $0xb0] sm:$0xf]
    %v519 = vld [vmem:[#allocation7 + $0xb4] sm:$0xff]
    %v520 = vld [vmem:[#allocation7 + $0xbc] sm:$0xf]
    %v553 = vunpack.c.l.b16 %v489
    %v554 = vunpack.c.h.b16 %v489
    %v555 = vunpack.c.l.b16 %v490
    %v556 = vunpack.c.l.b16 %v491
    %v557 = vunpack.c.h.b16 %v491
    %v558 = vunpack.c.l.b16 %v492
    %v559 = vunpack.c.l.b16 %v493
    %v560 = vunpack.c.h.b16 %v493
    %v561 = vunpack.c.l.b16 %v494
    %v562 = vunpack.c.l.b16 %v495
    %v563 = vunpack.c.h.b16 %v495
    %v564 = vunpack.c.l.b16 %v496
    %v565 = vunpack.c.l.b16 %v497
    %v566 = vunpack.c.h.b16 %v497
    %v567 = vunpack.c.l.b16 %v498
    %v568 = vunpack.c.l.b16 %v499
    %v569 = vunpack.c.h.b16 %v499
    %v570 = vunpack.c.l.b16 %v500
    %v571 = vunpack.c.l.b16 %v501
    %v572 = vunpack.c.h.b16 %v501
    %v573 = vunpack.c.l.b16 %v502
    %v574 = vunpack.c.l.b16 %v503
    %v575 = vunpack.c.h.b16 %v503
    %v576 = vunpack.c.l.b16 %v504
    %v577 = vunpack.c.l.b16 %v505
    %v578 = vunpack.c.h.b16 %v505
    %v579 = vunpack.c.l.b16 %v506
    %v580 = vunpack.c.l.b16 %v507
    %v581 = vunpack.c.h.b16 %v507
    %v582 = vunpack.c.l.b16 %v508
    %v583 = vunpack.c.l.b16 %v509
    %v584 = vunpack.c.h.b16 %v509
    %v585 = vunpack.c.l.b16 %v510
    %v586 = vunpack.c.l.b16 %v511
    %v587 = vunpack.c.h.b16 %v511
    %v588 = vunpack.c.l.b16 %v512
    %v589 = vunpack.c.l.b16 %v513
    %v590 = vunpack.c.h.b16 %v513
    %v591 = vunpack.c.l.b16 %v514
    %v592 = vunpack.c.l.b16 %v515
    %v593 = vunpack.c.h.b16 %v515
    %v594 = vunpack.c.l.b16 %v516
    %v595 = vunpack.c.l.b16 %v517
    %v596 = vunpack.c.h.b16 %v517
    %v597 = vunpack.c.l.b16 %v518
    %v598 = vunpack.c.l.b16 %v519
    %v599 = vunpack.c.h.b16 %v519
    %v600 = vunpack.c.l.b16 %v520
    %v601 = vpack.c.b16 %v556, %v553
    %v602 = vpack.c.b16 %v557, %v554
    %v603 = vpack.c.b16 %v558, %v555
    %v604 = vpack.c.b16 %v562, %v559
    %v605 = vpack.c.b16 %v563, %v560
    %v606 = vpack.c.b16 %v564, %v561
    %v607 = vpack.c.b16 %v568, %v565
    %v608 = vpack.c.b16 %v569, %v566
    %v609 = vpack.c.b16 %v570, %v567
    %v610 = vpack.c.b16 %v574, %v571
    %v611 = vpack.c.b16 %v575, %v572
    %v612 = vpack.c.b16 %v576, %v573
    %v613 = vpack.c.b16 %v580, %v577
    %v614 = vpack.c.b16 %v581, %v578
    %v615 = vpack.c.b16 %v582, %v579
    %v616 = vpack.c.b16 %v586, %v583
    %v617 = vpack.c.b16 %v587, %v584
    %v618 = vpack.c.b16 %v588, %v585
    %v619 = vpack.c.b16 %v592, %v589
    %v620 = vpack.c.b16 %v593, %v590
    %v621 = vpack.c.b16 %v594, %v591
    %v622 = vpack.c.b16 %v598, %v595
    %v623 = vpack.c.b16 %v599, %v596
    %v624 = vpack.c.b16 %v600, %v597
    %649 = vmatprep.subr.bf16.mxu0 %v602
    %650 = vmatpush1.bf16.msra.mxu0 %v601
    %651 = vmatprep.subr.bf16.mxu0 %v605
    %652 = vmatpush1.bf16.msra.mxu0 %v604
    %653 = vmatprep.subr.bf16.mxu0 %v608
    %654 = vmatpush1.bf16.msra.mxu0 %v607
    %655 = vmatprep.subr.bf16.mxu0 %v611
    %656 = vmatpush1.bf16.msra.mxu0 %v610
    %657 = vmatprep.subr.bf16.mxu0 %v614
    %658 = vmatpush1.bf16.msra.mxu0 %v613
    %659 = vmatprep.subr.bf16.mxu0 %v617
    %660 = vmatpush1.bf16.msra.mxu0 %v616
    %661 = vmatprep.subr.bf16.mxu0 %v620
    %662 = vmatpush1.bf16.msra.mxu0 %v619
    %663 = vmatprep.subr.bf16.mxu0 %v623
    %664 = vmatpush1.bf16.msra.mxu0 %v622
    %665 = vmatprep.subr.bf16.mxu0 0
    %666 = vmatpush1.bf16.msra.mxu0 0
    %667 = vmatprep.subr.bf16.mxu0 0
    %668 = vmatpush1.bf16.msra.mxu0 0
    %669 = vmatprep.subr.bf16.mxu0 0
    %670 = vmatpush1.bf16.msra.mxu0 0
    %671 = vmatprep.subr.bf16.mxu0 0
    %672 = vmatpush1.bf16.msra.mxu0 0
    %673 = vmatprep.subr.bf16.mxu0 0
    %674 = vmatpush1.bf16.msra.mxu0 0
    %675 = vmatprep.subr.bf16.mxu0 0
    %676 = vmatpush1.bf16.msra.mxu0 0
    %677 = vmatprep.subr.bf16.mxu0 0
    %678 = vmatpush1.bf16.msra.mxu0 0
    %679 = vmatprep.subr.bf16.mxu0 0
    %680 = vmatpush1.bf16.msra.mxu0 0
    %681 = vmatprep.mubr.bf16.mxu0 0
    %682 = vmatmul.mubr.bf16.gmra.mrb[0].mxu0 %v487
    %v683 = vpop.f32.mrb[0].mxu0
    %v684 = vadd.f32 0.0, %v683
    %v685 = vpop.f32.mrb[0].mxu0
    %v686 = vadd.f32 0.0, %v685
    %v687 = vpop.f32.mrb[0].mxu0
    %v688 = vadd.f32 0.0, %v687
    %v689 = vpop.f32.mrb[0].mxu0
    %v690 = vadd.f32 0.0, %v689
    %691 = vmatprep.mubr.bf16.mxu0 0
    %692 = vmatmul.mubr.bf16.gmra.mrb[0].mxu0 %v488
    %v693 = vpop.f32.mrb[0].mxu0
    %v694 = vadd.f32 0.0, %v693
    %v695 = vpop.f32.mrb[0].mxu0
    %v696 = vadd.f32 0.0, %v695
    %v697 = vpop.f32.mrb[0].mxu0
    %v698 = vadd.f32 0.0, %v697
    %v699 = vpop.f32.mrb[0].mxu0
    %v700 = vadd.f32 0.0, %v699
    %701 = vdwg.mxu0
    %702 = vmatprep.subr.bf16.mxu0 0
    %703 = vmatpush1.bf16.msra.mxu0 %v603
    %704 = vmatprep.subr.bf16.mxu0 0
    %705 = vmatpush1.bf16.msra.mxu0 %v606
    %706 = vmatprep.subr.bf16.mxu0 0
    %707 = vmatpush1.bf16.msra.mxu0 %v609
    %708 = vmatprep.subr.bf16.mxu0 0
    %709 = vmatpush1.bf16.msra.mxu0 %v612
    %710 = vmatprep.subr.bf16.mxu0 0
    %711 = vmatpush1.bf16.msra.mxu0 %v615
    %712 = vmatprep.subr.bf16.mxu0 0
    %713 = vmatpush1.bf16.msra.mxu0 %v618
    %714 = vmatprep.subr.bf16.mxu0 0
    %715 = vmatpush1.bf16.msra.mxu0 %v621
    %716 = vmatprep.subr.bf16.mxu0 0
    %717 = vmatpush1.bf16.msra.mxu0 %v624
    %718 = vmatprep.subr.bf16.mxu0 0
    %719 = vmatpush1.bf16.msra.mxu0 0
    %720 = vmatprep.subr.bf16.mxu0 0
    %721 = vmatpush1.bf16.msra.mxu0 0
    %722 = vmatprep.subr.bf16.mxu0 0
    %723 = vmatpush1.bf16.msra.mxu0 0
    %724 = vmatprep.subr.bf16.mxu0 0
    %725 = vmatpush1.bf16.msra.mxu0 0
    %726 = vmatprep.subr.bf16.mxu0 0
    %727 = vmatpush1.bf16.msra.mxu0 0
    %728 = vmatprep.subr.bf16.mxu0 0
    %729 = vmatpush1.bf16.msra.mxu0 0
    %730 = vmatprep.subr.bf16.mxu0 0
    %731 = vmatpush1.bf16.msra.mxu0 0
    %732 = vmatprep.subr.bf16.mxu0 0
    %733 = vmatpush1.bf16.msra.mxu0 0
    %734 = vmatprep.mubr.bf16.mxu0 0
    %735 = vmatmul.mubr.bf16.gmra.mrb[0].mxu0 %v487
    %v736 = vpop.f32.mrb[0].mxu0
    %v737 = vadd.f32 0.0, %v736
    %v738 = vpop.f32.mrb[0].mxu0
    %v739 = vpop.f32.mrb[0].mxu0
    %v740 = vadd.f32 0.0, %v739
    %v741 = vpop.f32.mrb[0].mxu0
    %742 = vmatprep.mubr.bf16.mxu0 0
    %743 = vmatmul.mubr.bf16.gmra.mrb[0].mxu0 %v488
    %v744 = vpop.f32.mrb[0].mxu0
    %v745 = vadd.f32 0.0, %v744
    %v746 = vpop.f32.mrb[0].mxu0
    %v747 = vpop.f32.mrb[0].mxu0
    %v748 = vadd.f32 0.0, %v747
    %v749 = vpop.f32.mrb[0].mxu0
    %750 = vdwg.mxu0
    %v751 = vrot.slane %v684, 7
    %v752 = vrot.slane %v688, 7
    %v753 = vrot.slane %v694, 7
    %v754 = vrot.slane %v698, 7
    %v755 = vsel %vm376, %v753, %v754
    %v756 = vsel %vm376, %v752, %v753
    %v757 = vsel %vm376, %v751, %v752
    %v758 = vsel %vm376, %v754, %v751
    %v759 = vrot.slane %v737, 1
    %v760 = vrot.slane %v740, 1
    %v761 = vrot.slane %v745, 1
    %v762 = vrot.slane %v748, 1
    %v763 = vsel %vm385, %v761, %v762
    %v764 = vsel %vm385, %v760, %v761
    %v765 = vsel %vm385, %v759, %v760
    %v766 = vsel %vm385, %v762, %v759
    %v767 = vmul.f32 %v133, %v758
    %v768 = vmul.f32 %v134, %v757
    %v769 = vmul.f32 %v135, %v756
    %v770 = vmul.f32 %v136, %v755
    %v771 = vadd.f32 %v686, %v767
    %v772 = vadd.f32 %v690, %v768
    %v773 = vadd.f32 %v696, %v769
    %v774 = vadd.f32 %v700, %v770
    %v775 = vmul.f32 %v145, %v765
    %v776 = vmul.f32 %v146, %v764
    %v777 = vmul.f32 %v147, %v763
    %v778 = vmul.f32 %v148, %v766
    %v779 = vadd.f32 %v771, %v775
    %v780 = vadd.f32 %v772, %v776
    %v781 = vadd.f32 %v773, %v777
    %v782 = vadd.f32 %v774, %v778
    %v783 = vadd.f32 %v779, %v780
    %v784 = vadd.f32 %v783, %v781
    %v785 = vadd.f32 %v784, %v782
    %v786 = vrot.slane %v785, 4
    %v787 = vadd.f32 %v785, %v786
    %v788 = vrot.slane %v787, 2
    %v789 = vadd.f32 %v787, %v788
    %v790 = vrot.slane %v789, 1
    %v791 = vadd.f32 %v789, %v790
    %792 = vrot.lane.b32.xlu0 %v791, 64
    %v793 = vpop.permute.xlu0 %792
    %v794 = vadd.f32 %v791, %v793
    %795 = vrot.lane.b32.xlu0 %v794, 32
    %v796 = vpop.permute.xlu0 %795
    %v797 = vadd.f32 %v794, %v796
    %798 = vrot.lane.b32.xlu0 %v797, 16
    %v799 = vpop.permute.xlu0 %798
    %v800 = vadd.f32 %v797, %v799
    %801 = vrot.lane.b32.xlu0 %v800, 8
    %v802 = vpop.permute.xlu0 %801
    %v803 = vadd.f32 %v800, %v802
    %v804 = vmul.f32 %v779, %v779
    %v805 = vmul.f32 %v780, %v780
    %v806 = vmul.f32 %v781, %v781
    %v807 = vmul.f32 %v782, %v782
    %v808 = vadd.f32 %v804, %v805
    %v809 = vadd.f32 %v808, %v806
    %v810 = vadd.f32 %v809, %v807
    %v811 = vrot.slane %v810, 4
    %v812 = vadd.f32 %v810, %v811
    %v813 = vrot.slane %v812, 2
    %v814 = vadd.f32 %v812, %v813
    %v815 = vrot.slane %v814, 1
    %v816 = vadd.f32 %v814, %v815
    %817 = vrot.lane.b32.xlu0 %v816, 64
    %v818 = vpop.permute.xlu0 %817
    %v819 = vadd.f32 %v816, %v818
    %820 = vrot.lane.b32.xlu0 %v819, 32
    %v821 = vpop.permute.xlu0 %820
    %v822 = vadd.f32 %v819, %v821
    %823 = vrot.lane.b32.xlu0 %v822, 16
    %v824 = vpop.permute.xlu0 %823
    %v825 = vadd.f32 %v822, %v824
    %826 = vrot.lane.b32.xlu0 %v825, 8
    %v827 = vpop.permute.xlu0 %826
    %v828 = vadd.f32 %v825, %v827
    %v829 = vmul.f32 %v803, 0.001953125
    %v830 = vmul.f32 %v828, 0.001953125
    %v831 = vmul.f32 %v829, %v829
    %v832 = vsub.f32 %v830, %v831
    %v833 = vld [vmem:[%s5] sm:$0x1]
    %v834 = vadd.f32 %v832, 1e-05
    %v835 = vrsqrt.pop %v834
    %v836 = vmul.f32 %v833, %v835
    %v837 = vld [vmem:[%s6] sm:$0x1]
    %v838 = vmul.f32 %v829, %v836
    %v839 = vsub.f32 %v837, %v838
    %v841 = vlaneseq
    %v842 = vshrl.u32 %v841, 7
    %v843 = vsub.s32 0, %v842
    %v844 = vrot.slane %v836, %v843
    %v846 = vmul.f32 %v779, %v844
    %v847 = vmul.f32 %v780, %v844
    %v848 = vmul.f32 %v781, %v844
    %v849 = vmul.f32 %v782, %v844
    %v851 = vlaneseq
    %v852 = vshrl.u32 %v851, 7
    %v853 = vsub.s32 0, %v852
    %v854 = vrot.slane %v839, %v853
    %v856 = vadd.f32 %v846, %v854
    %v857 = vadd.f32 %v847, %v854
    %v858 = vadd.f32 %v848, %v854
    %v859 = vadd.f32 %v849, %v854
    %v860 = vld [vmem:[%s7] sm:$0x1]
    %v862 = vlaneseq
    %v863 = vshrl.u32 %v862, 7
    %v864 = vsub.s32 0, %v863
    %v865 = vrot.slane %v860, %v864
    %v867 = vadd.f32 %v356, %v865
    %v868 = vadd.f32 %v360, %v865
    %v869 = vadd.f32 %v366, %v865
    %v870 = vadd.f32 %v370, %v865
    %v871 = vadd.f32 %v856, %v867
    %v872 = vadd.f32 %v857, %v868
    %v873 = vadd.f32 %v858, %v869
    %v874 = vadd.f32 %v859, %v870
    %v875 = vmax.f32 %v871, 0.0
    %v876 = vmax.f32 %v872, 0.0
    %v877 = vmax.f32 %v873, 0.0
    %v878 = vmax.f32 %v874, 0.0
    %879 = vst [vmem:[#allocation8] sm:$0xff] %v875
    %880 = vst [vmem:[#allocation8 + $0x8] sm:$0xff] %v876
    %881 = vst [vmem:[#allocation8 + $0x10] sm:$0xff] %v877
    %882 = vst [vmem:[#allocation8 + $0x18] sm:$0xff] %v878
    // Predicated region
    $region46: #{tpu_custom_call.1} parent=1 // pred_check
      _
    $region47: #{tpu_custom_call.1} parent=1 // pred_check_branch
      %884 = sbr.rel (0) target = $region49
    $region48: #{tpu_custom_call.1} parent=1 // pred_region
      %s886 = ssub.s32 512, 512
      %887 = vsyncadd [#allocation4], %s886
      %s888 = sshll.u32 [#allocation8], 4
      %s889 = int_to_ptr.vmem [resolvable:$true] %s888
      %894 = dma.vmem_to_hbm [thread:$0]  %s889, 512, %s8, [#allocation4], 128, 128, 8
    $region49: #{tpu_custom_call.1} parent=1 // pred_fallthru
      _
    // Predicated region
    $region50: #{tpu_custom_call.1} parent=1 // pred_check
      _
    $region51: #{tpu_custom_call.1} parent=1 // pred_check_branch
      %896 = sbr.rel (0) target = $region53
    $region52: #{tpu_custom_call.1} parent=1 // pred_region
      %897 = dma.done [#allocation4], 512
    $region53: #{tpu_custom_call.1} parent=1 // pred_fallthru
      _
    %898 = vsyncpa [#allocation3], 1
    %899 = vsyncpa [#allocation6], 1
    %900 = vsyncpa [#allocation4], 1

</llo_original>
